<compile_context>
chip_gen: v5e
topology: v5e:2x2
jax: 0.10.0
libtpu: 0.0.40
codegen_flags: <defaults>
</compile_context>

<pallas_src>
import jax
import jax.numpy as jnp
from jax.experimental import pallas as pl
from jax.experimental.pallas import tpu as pltpu


_LANES = 1024      # lane-dense slab width (multiple of 128)
_SUBLANE = 8
_TR_MAX = 512      # rows per grid step -> 512*1024*4B = 2 MiB per f32 buffer


def _poisson_kernel(seed_ref, x_ref, o_ref):
    tr, tc = x_ref.shape
    i = pl.program_id(0)

    # Global element index of every lane in this tile (row-major over the slab).
    row = jax.lax.broadcasted_iota(jnp.int32, (tr, tc), 0) + i * tr
    col = jax.lax.broadcasted_iota(jnp.int32, (tr, tc), 1)
    idx = (row * tc + col).astype(jnp.uint32)

    # Counter-based hash RNG: mix (global index, seed) -> 32 uniform random bits.
    seed = seed_ref[0].astype(jnp.uint32)
    h = idx + seed * jnp.uint32(0x9E3779B9)
    h = h ^ (h >> 16)
    h = h * jnp.uint32(0x7FEB352D)
    h = h ^ (h >> 15)
    h = h * jnp.uint32(0x846CA68B)
    h = h ^ (h >> 16)

    # Top 24 bits -> uniform float32 in [0, 1).
    u = (h >> 8).astype(jnp.int32).astype(jnp.float32) * jnp.float32(1.0 / (1 << 24))

    # rand_like(x).le(x)  ==  u <= x ; cast back to x's dtype.
    o_ref[...] = (u <= x_ref[...].astype(jnp.float32)).astype(o_ref.dtype)


def poisson_encode(x: jax.Array, seed: int = 0) -> jax.Array:
    """Pallas TPU implementation of PoissonEncoder.forward.

    Vary `seed` per timestep to get fresh spike trains (torch.rand_like draws
    new randomness on every call).
    """
    orig_shape = x.shape
    orig_dtype = x.dtype

    flat = x.reshape(-1)
    n = flat.shape[0]
    chunk = _SUBLANE * _LANES

    # Pad only when needed; zero-copy path for aligned sizes (common NCHW case).
    n_pad = (-n) % chunk
    if n_pad:
        flat = jnp.pad(flat, (0, n_pad))
    rows = (n + n_pad) // _LANES
    x2 = flat.reshape(rows, _LANES)

    tr = min(_TR_MAX, rows)          # multiple of 8 (rows is a multiple of 8)
    grid = (pl.cdiv(rows, tr),)

    seed_arr = jnp.asarray([seed], dtype=jnp.int32)

    out2 = pl.pallas_call(
        _poisson_kernel,
        out_shape=jax.ShapeDtypeStruct((rows, _LANES), orig_dtype),
        grid=grid,
        in_specs=[
            pl.BlockSpec(memory_space=pltpu.MemorySpace.SMEM),   # seed scalar
            pl.BlockSpec((tr, _LANES), lambda i: (i, 0)),        # x tile
        ],
        out_specs=pl.BlockSpec((tr, _LANES), lambda i: (i, 0)),
        compiler_params=pltpu.CompilerParams(
            dimension_semantics=("parallel",)),
        cost_estimate=pl.CostEstimate(
            flops=12 * n,
            transcendentals=0,
            bytes_accessed=2 * n * x.dtype.itemsize),
    )(seed_arr, x2)

    if n_pad:
        return out2.reshape(-1)[:n].reshape(orig_shape)
    return out2.reshape(orig_shape)


if __name__ == "__main__":
    key = jax.random.PRNGKey(0)

    # NCHW input, values in [0, 1] as required by PoissonEncoder.
    x = jax.random.uniform(key, (2, 4, 16, 16), dtype=jnp.float32)
    spikes = jax.block_until_ready(poisson_encode(x, seed=0))

    assert spikes.shape == x.shape
    assert spikes.dtype == x.dtype
    assert bool(jnp.all((spikes == 0.0) | (spikes == 1.0)))
    rate, mean_x = float(jnp.mean(spikes)), float(jnp.mean(x))
    assert abs(rate - mean_x) < 0.1, (rate, mean_x)

    # Second shape exercising the zero-copy (aligned) path.
    x1 = jax.random.uniform(jax.random.PRNGKey(1), (2, 4, 32, 32), dtype=jnp.float32)
    s1 = jax.block_until_ready(poisson_encode(x1, seed=3))
    assert s1.shape == x1.shape
    assert bool(jnp.all((s1 == 0.0) | (s1 == 1.0)))
    assert abs(float(jnp.mean(s1)) - float(jnp.mean(x1))) < 0.1

    # Different seeds give different spike trains (deterministic per seed).
    s_a = poisson_encode(x, seed=7)
    s_b = poisson_encode(x, seed=8)
    assert bool(jnp.any(s_a != s_b))

    print("KERNEL_OK")
</pallas_src>

<mosaic_0001>
module attributes {stable_mosaic.version = 11 : i64} {
  func.func @_poisson_kernel(%arg0: i32, %arg1: memref<1xi32, #tpu.memory_space<smem>>, %arg2: memref<8x1024xf32, #tpu.memory_space<vmem>>, %arg3: memref<8x1024xf32, #tpu.memory_space<vmem>>) attributes {dimension_semantics = [#tpu.dimension_semantics<parallel>], iteration_bounds = array<i64: 1>, scalar_prefetch = 0 : i64, scratch_operands = 0 : i64, tpu.core_type = #tpu.core_type<tc>, window_params = [{transform_indices = @transform_0, window_bounds = array<i64: 1>}, {transform_indices = @transform_1, window_bounds = array<i64: 8, 1024>}, {transform_indices = @transform_2, window_bounds = array<i64: 8, 1024>}]} {
    %0 = tpu.iota {dimensions = array<i32: 0>} : vector<8x1024xi32>
    %c8_i32 = arith.constant 8 : i32
    %1 = arith.muli %arg0, %c8_i32 : i32
    %2 = vector.broadcast %1 : i32 to vector<8x1024xi32>
    %3 = arith.addi %0, %2 : vector<8x1024xi32>
    %4 = tpu.iota {dimensions = array<i32: 1>} : vector<8x1024xi32>
    %c1024_i32 = arith.constant 1024 : i32
    %5 = vector.broadcast %c1024_i32 : i32 to vector<8x1024xi32>
    %6 = arith.muli %3, %5 : vector<8x1024xi32>
    %7 = arith.addi %6, %4 : vector<8x1024xi32>
    %c0 = arith.constant 0 : index
    %8 = memref.load %arg1[%c0] : memref<1xi32, #tpu.memory_space<smem>>
    %c-1640531527_i32 = arith.constant -1640531527 : i32
    %9 = arith.muli %8, %c-1640531527_i32 : i32
    %10 = vector.broadcast %9 : i32 to vector<8x1024xi32>
    %11 = arith.addi %7, %10 : vector<8x1024xi32>
    %c16_i32 = arith.constant 16 : i32
    %12 = vector.broadcast %c16_i32 : i32 to vector<8x1024xi32>
    %13 = arith.shrui %11, %12 : vector<8x1024xi32>
    %14 = arith.xori %11, %13 : vector<8x1024xi32>
    %c2146121005_i32 = arith.constant 2146121005 : i32
    %15 = vector.broadcast %c2146121005_i32 : i32 to vector<8x1024xi32>
    %16 = arith.muli %14, %15 : vector<8x1024xi32>
    %c15_i32 = arith.constant 15 : i32
    %17 = vector.broadcast %c15_i32 : i32 to vector<8x1024xi32>
    %18 = arith.shrui %16, %17 : vector<8x1024xi32>
    %19 = arith.xori %16, %18 : vector<8x1024xi32>
    %c-2073254261_i32 = arith.constant -2073254261 : i32
    %20 = vector.broadcast %c-2073254261_i32 : i32 to vector<8x1024xi32>
    %21 = arith.muli %19, %20 : vector<8x1024xi32>
    %c16_i32_0 = arith.constant 16 : i32
    %22 = vector.broadcast %c16_i32_0 : i32 to vector<8x1024xi32>
    %23 = arith.shrui %21, %22 : vector<8x1024xi32>
    %24 = arith.xori %21, %23 : vector<8x1024xi32>
    %c8_i32_1 = arith.constant 8 : i32
    %25 = vector.broadcast %c8_i32_1 : i32 to vector<8x1024xi32>
    %26 = arith.shrui %24, %25 : vector<8x1024xi32>
    %27 = arith.sitofp %26 : vector<8x1024xi32> to vector<8x1024xf32>
    %cst = arith.constant 5.96046448E-8 : f32
    %28 = vector.broadcast %cst : f32 to vector<8x1024xf32>
    %29 = arith.mulf %27, %28 : vector<8x1024xf32>
    %c0_2 = arith.constant 0 : index
    %c0_3 = arith.constant 0 : index
    %30 = vector.load %arg2[%c0_2, %c0_3] : memref<8x1024xf32, #tpu.memory_space<vmem>>, vector<8x1024xf32>
    %31 = arith.cmpf ole, %29, %30 : vector<8x1024xf32>
    %32 = arith.extui %31 : vector<8x1024xi1> to vector<8x1024xi32>
    %33 = arith.sitofp %32 : vector<8x1024xi32> to vector<8x1024xf32>
    %c0_4 = arith.constant 0 : index
    %c0_5 = arith.constant 0 : index
    %34 = vector.load %arg3[%c0_4, %c0_5] : memref<8x1024xf32, #tpu.memory_space<vmem>>, vector<8x1024xf32>
    tpu.vector_store %arg3[%c0_4, %c0_5], %33 {strides = array<i32>} : memref<8x1024xf32, #tpu.memory_space<vmem>>, vector<8x1024xf32>,
    return
  }
  func.func @transform_0(%arg0: i32) -> i32 {
    %c0_i32 = arith.constant 0 : i32
    %c0_i32_0 = arith.constant 0 : i32
    return %c0_i32 : i32
  }
  func.func @transform_1(%arg0: i32) -> (i32, i32) {
    %c0_i32 = arith.constant 0 : i32
    %c0_i32_0 = arith.constant 0 : i32
    return %arg0, %c0_i32 : i32, i32
  }
  func.func @transform_2(%arg0: i32) -> (i32, i32) {
    %c0_i32 = arith.constant 0 : i32
    %c0_i32_0 = arith.constant 0 : i32
    return %arg0, %c0_i32 : i32, i32
  }
}

</mosaic_0001>

<llo_original>
// kernel: tpu_custom_call.1
$region0: #{tpu_custom_call.1}
  #allocation0 [shape = 'u32[]', space=smem, size = 0x4, offset = 0x4, fixed_abs, tag = 'smem constant byte address 0x4 - core index']
  #allocation1 [shape = 'u32[72,128]{1,0:T(1,128)}', space=vmem, size = 0x9000, scoped, tag = 'internal scratch']
  #allocation2 [shape = 's32[1]{0:T(128)S(6)}', space=smem, size = 0x200, scoped, tag = 'scoped memory for tpu_custom_call.1']
  %s0 = inlined_call_operand.<no memory space> [shape: s32[1], index: 0, kind: input, shape index: {}]
  %s1 = inlined_call_operand.hbm [shape: f32[8,1024], index: 1, kind: input, shape index: {}]
  %s2 = inlined_call_operand.hbm [shape: f32[8,1024], index: 2, kind: output, shape index: {}]
  %s3 = sld [smem:[#allocation0]]
  $region22: #{tpu_custom_call.1} parent=0
    _
  %s5 = ssub.s32 1, %s3
  %s6 = scalar_select 0, %s5, %s3
  %7 = sst [smem:[#allocation2]] %s0
  $region1: #{tpu_custom_call.1} parent=0
    #allocation3 [shape = 'u8[32768]{0}', space=vmem, size = 0x8000, scoped, tag = 'input window, operand 1, single buffered']
    #allocation4 [shape = 's32[1]{0}', space=sflag, size = 0x4, scoped, tag = 'scoped memory for tpu_custom_call.1']
    #allocation5 [shape = 's32[1]{0}', space=sflag, size = 0x4, scoped, tag = 'scoped memory for tpu_custom_call.1']
    #allocation6 [shape = 'u8[32768]{0}', space=vmem, size = 0x8000, scoped, tag = 'output window, operand 0, single buffered']
    %8 = vsyncpa [#allocation4], 0
    %9 = vsyncpa [#allocation5], 0
    // Predicated region
    $region2: #{tpu_custom_call.1} parent=1 // pred_check
      _
    $region3: #{tpu_custom_call.1} parent=1 // pred_check_branch
      %11 = sbr.rel (0) target = $region5
    $region4: #{tpu_custom_call.1} parent=1 // pred_region
      _
    $region5: #{tpu_custom_call.1} parent=1 // pred_fallthru
      _
    // Predicated region
    $region6: #{tpu_custom_call.1} parent=1 // pred_check
      _
    $region7: #{tpu_custom_call.1} parent=1 // pred_check_branch
      %13 = sbr.rel (0) target = $region9
    $region8: #{tpu_custom_call.1} parent=1 // pred_region
      %15 = vsyncadd [#allocation4], 0
      %s17 = sshll.u32 %s1, 4
      %s18 = int_to_ptr.hbm [resolvable:$true] %s17
      %s19 = sshll.u32 [#allocation3], 4
      %s20 = int_to_ptr.vmem [resolvable:$true] %s19
      %22 = dma.hbm_to_vmem [thread:$0]  %s18, 1024, %s20, [#allocation4]
    $region9: #{tpu_custom_call.1} parent=1 // pred_fallthru
      _
    // Predicated region
    $region10: #{tpu_custom_call.1} parent=1 // pred_check
      _
    $region11: #{tpu_custom_call.1} parent=1 // pred_check_branch
      %24 = sbr.rel (0) target = $region13
    $region12: #{tpu_custom_call.1} parent=1 // pred_region
      %26 = dma.done [#allocation4], 1024
    $region13: #{tpu_custom_call.1} parent=1 // pred_fallthru
      _
    %v27 = vlaneseq
    %v28 = vshrl.u32 %v27, 7
    %s29 = smul.u32 0, 8
    %v30 = vstv %s29
    %v31 = vadd.s32 %v28, %v30
    %v32 = vlaneseq
    %v33 = vand.u32 %v32, 127
    %v34 = vadd.s32 %v33, 128
    %v35 = vadd.s32 %v33, 256
    %v36 = vadd.s32 %v33, 384
    %v37 = vadd.s32 %v33, 512
    %v38 = vadd.s32 %v33, 640
    %v39 = vadd.s32 %v33, 768
    %v40 = vadd.s32 %v33, 896
    %v41 = vmul.u32 %v31, 1024
    %v42 = vadd.s32 %v41, %v33
    %v43 = vadd.s32 %v41, %v34
    %v44 = vadd.s32 %v41, %v35
    %v45 = vadd.s32 %v41, %v36
    %v46 = vadd.s32 %v41, %v37
    %v47 = vadd.s32 %v41, %v38
    %v48 = vadd.s32 %v41, %v39
    %v49 = vadd.s32 %v41, %v40
    %s50 = sld [smem:[#allocation2]]
    %s51 = smul.u32 %s50, 2654435769
    %v52 = vstv %s51
    %v53 = vadd.s32 %v42, %v52
    %v54 = vadd.s32 %v43, %v52
    %v55 = vadd.s32 %v44, %v52
    %v56 = vadd.s32 %v45, %v52
    %v57 = vadd.s32 %v46, %v52
    %v58 = vadd.s32 %v47, %v52
    %v59 = vadd.s32 %v48, %v52
    %v60 = vadd.s32 %v49, %v52
    %v61 = vshrl.u32 %v53, 16
    %v62 = vshrl.u32 %v54, 16
    %v63 = vshrl.u32 %v55, 16
    %v64 = vshrl.u32 %v56, 16
    %v65 = vshrl.u32 %v57, 16
    %v66 = vshrl.u32 %v58, 16
    %v67 = vshrl.u32 %v59, 16
    %v68 = vshrl.u32 %v60, 16
    %v69 = vxor.u32 %v53, %v61
    %v70 = vxor.u32 %v54, %v62
    %v71 = vxor.u32 %v55, %v63
    %v72 = vxor.u32 %v56, %v64
    %v73 = vxor.u32 %v57, %v65
    %v74 = vxor.u32 %v58, %v66
    %v75 = vxor.u32 %v59, %v67
    %v76 = vxor.u32 %v60, %v68
    %v77 = vmul.u32 %v69, 2146121005
    %v78 = vmul.u32 %v70, 2146121005
    %v79 = vmul.u32 %v71, 2146121005
    %v80 = vmul.u32 %v72, 2146121005
    %v81 = vmul.u32 %v73, 2146121005
    %v82 = vmul.u32 %v74, 2146121005
    %v83 = vmul.u32 %v75, 2146121005
    %v84 = vmul.u32 %v76, 2146121005
    %v85 = vshrl.u32 %v77, 15
    %v86 = vshrl.u32 %v78, 15
    %v87 = vshrl.u32 %v79, 15
    %v88 = vshrl.u32 %v80, 15
    %v89 = vshrl.u32 %v81, 15
    %v90 = vshrl.u32 %v82, 15
    %v91 = vshrl.u32 %v83, 15
    %v92 = vshrl.u32 %v84, 15
    %v93 = vxor.u32 %v77, %v85
    %v94 = vxor.u32 %v78, %v86
    %v95 = vxor.u32 %v79, %v87
    %v96 = vxor.u32 %v80, %v88
    %v97 = vxor.u32 %v81, %v89
    %v98 = vxor.u32 %v82, %v90
    %v99 = vxor.u32 %v83, %v91
    %v100 = vxor.u32 %v84, %v92
    %v101 = vmul.u32 %v93, 2221713035
    %v102 = vmul.u32 %v94, 2221713035
    %v103 = vmul.u32 %v95, 2221713035
    %v104 = vmul.u32 %v96, 2221713035
    %v105 = vmul.u32 %v97, 2221713035
    %v106 = vmul.u32 %v98, 2221713035
    %v107 = vmul.u32 %v99, 2221713035
    %v108 = vmul.u32 %v100, 2221713035
    %v109 = vshrl.u32 %v101, 16
    %v110 = vshrl.u32 %v102, 16
    %v111 = vshrl.u32 %v103, 16
    %v112 = vshrl.u32 %v104, 16
    %v113 = vshrl.u32 %v105, 16
    %v114 = vshrl.u32 %v106, 16
    %v115 = vshrl.u32 %v107, 16
    %v116 = vshrl.u32 %v108, 16
    %v117 = vxor.u32 %v101, %v109
    %v118 = vxor.u32 %v102, %v110
    %v119 = vxor.u32 %v103, %v111
    %v120 = vxor.u32 %v104, %v112
    %v121 = vxor.u32 %v105, %v113
    %v122 = vxor.u32 %v106, %v114
    %v123 = vxor.u32 %v107, %v115
    %v124 = vxor.u32 %v108, %v116
    %v125 = vshrl.u32 %v117, 8
    %v126 = vshrl.u32 %v118, 8
    %v127 = vshrl.u32 %v119, 8
    %v128 = vshrl.u32 %v120, 8
    %v129 = vshrl.u32 %v121, 8
    %v130 = vshrl.u32 %v122, 8
    %v131 = vshrl.u32 %v123, 8
    %v132 = vshrl.u32 %v124, 8
    %v133 = vcvt.s32.f32 %v125
    %v134 = vcvt.s32.f32 %v126
    %v135 = vcvt.s32.f32 %v127
    %v136 = vcvt.s32.f32 %v128
    %v137 = vcvt.s32.f32 %v129
    %v138 = vcvt.s32.f32 %v130
    %v139 = vcvt.s32.f32 %v131
    %v140 = vcvt.s32.f32 %v132
    %v141 = vmul.f32 %v133, 5.9604645e-08
    %v142 = vmul.f32 %v134, 5.9604645e-08
    %v143 = vmul.f32 %v135, 5.9604645e-08
    %v144 = vmul.f32 %v136, 5.9604645e-08
    %v145 = vmul.f32 %v137, 5.9604645e-08
    %v146 = vmul.f32 %v138, 5.9604645e-08
    %v147 = vmul.f32 %v139, 5.9604645e-08
    %v148 = vmul.f32 %v140, 5.9604645e-08
    %v149 = vld [vmem:[#allocation3] sm:$0xff]
    %v150 = vld [vmem:[#allocation3 + $0x8] sm:$0xff]
    %v151 = vld [vmem:[#allocation3 + $0x10] sm:$0xff]
    %v152 = vld [vmem:[#allocation3 + $0x18] sm:$0xff]
    %v153 = vld [vmem:[#allocation3 + $0x20] sm:$0xff]
    %v154 = vld [vmem:[#allocation3 + $0x28] sm:$0xff]
    %v155 = vld [vmem:[#allocation3 + $0x30] sm:$0xff]
    %v156 = vld [vmem:[#allocation3 + $0x38] sm:$0xff]
    %vm157 = vcmp.le.f32.partialorder %v141, %v149
    %vm158 = vcmp.le.f32.partialorder %v142, %v150
    %vm159 = vcmp.le.f32.partialorder %v143, %v151
    %vm160 = vcmp.le.f32.partialorder %v144, %v152
    %vm161 = vcmp.le.f32.partialorder %v145, %v153
    %vm162 = vcmp.le.f32.partialorder %v146, %v154
    %vm163 = vcmp.le.f32.partialorder %v147, %v155
    %vm164 = vcmp.le.f32.partialorder %v148, %v156
    %v165 = vsel %vm157, 1, 0
    %v166 = vsel %vm158, 1, 0
    %v167 = vsel %vm159, 1, 0
    %v168 = vsel %vm160, 1, 0
    %v169 = vsel %vm161, 1, 0
    %v170 = vsel %vm162, 1, 0
    %v171 = vsel %vm163, 1, 0
    %v172 = vsel %vm164, 1, 0
    %v173 = vcvt.s32.f32 %v165
    %v174 = vcvt.s32.f32 %v166
    %v175 = vcvt.s32.f32 %v167
    %v176 = vcvt.s32.f32 %v168
    %v177 = vcvt.s32.f32 %v169
    %v178 = vcvt.s32.f32 %v170
    %v179 = vcvt.s32.f32 %v171
    %v180 = vcvt.s32.f32 %v172
    %181 = vst [vmem:[#allocation6] sm:$0xff] %v173
    %182 = vst [vmem:[#allocation6 + $0x8] sm:$0xff] %v174
    %183 = vst [vmem:[#allocation6 + $0x10] sm:$0xff] %v175
    %184 = vst [vmem:[#allocation6 + $0x18] sm:$0xff] %v176
    %185 = vst [vmem:[#allocation6 + $0x20] sm:$0xff] %v177
    %186 = vst [vmem:[#allocation6 + $0x28] sm:$0xff] %v178
    %187 = vst [vmem:[#allocation6 + $0x30] sm:$0xff] %v179
    %188 = vst [vmem:[#allocation6 + $0x38] sm:$0xff] %v180
    // Predicated region
    $region14: #{tpu_custom_call.1} parent=1 // pred_check
      _
    $region15: #{tpu_custom_call.1} parent=1 // pred_check_branch
      %190 = sbr.rel (0) target = $region17
    $region16: #{tpu_custom_call.1} parent=1 // pred_region
      %192 = vsyncadd [#allocation5], 0
      %s194 = sshll.u32 [#allocation6], 4
      %s195 = int_to_ptr.vmem [resolvable:$true] %s194
      %s196 = sshll.u32 %s2, 4
      %s197 = int_to_ptr.hbm [resolvable:$true] %s196
      %199 = dma.vmem_to_hbm [thread:$0]  %s195, 1024, %s197, [#allocation5]
    $region17: #{tpu_custom_call.1} parent=1 // pred_fallthru
      _
    // Predicated region
    $region18: #{tpu_custom_call.1} parent=1 // pred_check
      _
    $region19: #{tpu_custom_call.1} parent=1 // pred_check_branch
      %201 = sbr.rel (0) target = $region21
    $region20: #{tpu_custom_call.1} parent=1 // pred_region
      %203 = dma.done [#allocation5], 1024
    $region21: #{tpu_custom_call.1} parent=1 // pred_fallthru
      _
    %204 = vsyncpa [#allocation4], 1
    %205 = vsyncpa [#allocation5], 1

</llo_original>
